<compile_context>
chip_gen: v7x
topology: tpu7x:2x2x1
jax: 0.10.0
libtpu: 0.0.40
codegen_flags: <defaults>
</compile_context>

<pallas_src>
import jax
import jax.numpy as jnp
from jax import lax
from jax.experimental import pallas as pl
from jax.experimental.pallas import tpu as pltpu

EPS = 1e-5


# ----------------------------------------------------------------------------
# Channel-block heuristic (VMEM-budget aware, works on v5e/v6e/v7x)
# ----------------------------------------------------------------------------
def _choose_blk_c(c, t, t_out, hw, k, itemsize, n, budget_bytes=20 << 20):
    """Largest channel block (divisor of c) whose double-buffered in+out+coef
    blocks stay under `budget_bytes`; BLK_C must be a sublane multiple
    (8/16/32 for 4/2/1-byte dtypes) or the full channel dim."""
    sub = {4: 8, 2: 16, 1: 32}.get(itemsize, 8)
    legal = [d for d in range(1, c + 1)
             if c % d == 0 and (d == c or d % sub == 0)]

    def per_copy(blk):
        return blk * hw * (t + t_out) * itemsize + blk * t_out * k * 4

    fitting = [d for d in legal if 2 * per_copy(d) <= budget_bytes]
    if fitting:
        multi = [d for d in fitting if n * (c // d) >= 2]   # keep >=2 grid steps
        return (multi or fitting)[-1]
    return legal[0]


# ----------------------------------------------------------------------------
# Pallas kernel 1: spatial average pooling
#   x (n*t, c, HW)  --blocks (t, BLK_C, HW)-->  pooled (n, c//BLK_C, t, BLK_C)
# ----------------------------------------------------------------------------
def _pool_kernel(x_ref, o_ref):
    x = x_ref[...].astype(jnp.float32)          # (t, BLK_C, HW)
    o_ref[0, 0] = jnp.mean(x, axis=-1)          # (t, BLK_C)


def spatial_mean(x2, *, n, c, t, HW, BLK_C):
    G_ = c // BLK_C
    isz = jnp.dtype(x2.dtype).itemsize
    need = 2 * (t * BLK_C * HW * isz + t * BLK_C * 4)
    vmem_limit = int(min(max(need + (8 << 20), 32 << 20), 64 << 20))
    return pl.pallas_call(
        _pool_kernel,
        out_shape=jax.ShapeDtypeStruct((n, G_, t, BLK_C), jnp.float32),
        grid=(n, G_),
        in_specs=[pl.BlockSpec((t, BLK_C, HW), lambda i, j: (i, j, 0))],
        out_specs=pl.BlockSpec((1, 1, t, BLK_C), lambda i, j: (i, j, 0, 0)),
        compiler_params=pltpu.CompilerParams(
            dimension_semantics=("parallel", "parallel"),
            vmem_limit_bytes=vmem_limit),
    )(x2)


# ----------------------------------------------------------------------------
# Pallas kernel 2: fused modulation + depthwise temporal conv
#   out[to] = sum_k cw[:, to*K + k] * x[to*S + k - P]   (zero-padded in t)
# The T axis is the leading (major) block dim, so tap shifts are free vreg
# selections; boundary taps are simply skipped (their coefficients are zero).
# ----------------------------------------------------------------------------
def _make_modconv_kernel(T, T_out, K, P, S, BLK_C, HW, out_dtype):
    def kernel(x_ref, cw_ref, o_ref):
        cw = cw_ref[0, 0]                                    # (BLK_C, T_out*K) f32
        for to in range(T_out):                              # static, small
            acc = None
            for k in range(K):
                ts = to * S + k - P
                if ts < 0 or ts >= T:
                    continue                                 # zero-padded tap
                col = to * K + k
                coef = cw[:, col:col + 1]                    # (BLK_C, 1)
                term = x_ref[ts].astype(jnp.float32) * coef  # (BLK_C, HW)
                acc = term if acc is None else acc + term
            if acc is None:                                  # degenerate config
                acc = jnp.zeros((BLK_C, HW), jnp.float32)
            o_ref[to] = acc.astype(out_dtype)
    return kernel


def mod_temporal_conv(x2, cw_b, *, n, c, t, HW, K, P, S, T_out, BLK_C):
    G_ = c // BLK_C
    out_dtype = x2.dtype
    isz = jnp.dtype(out_dtype).itemsize
    kern = _make_modconv_kernel(t, T_out, K, P, S, BLK_C, HW, out_dtype)
    need = 2 * (BLK_C * HW * (t + T_out) * isz + BLK_C * T_out * K * 4)
    vmem_limit = int(min(max(need + (8 << 20), 32 << 20), 64 << 20))
    return pl.pallas_call(
        kern,
        out_shape=jax.ShapeDtypeStruct((n * T_out, c, HW), out_dtype),
        grid=(n, G_),
        in_specs=[
            pl.BlockSpec((t, BLK_C, HW), lambda i, j: (i, j, 0)),
            pl.BlockSpec((1, 1, BLK_C, T_out * K), lambda i, j: (i, j, 0, 0)),
        ],
        out_specs=pl.BlockSpec((T_out, BLK_C, HW), lambda i, j: (i, j, 0)),
        compiler_params=pltpu.CompilerParams(
            dimension_semantics=("parallel", "parallel"),
            vmem_limit_bytes=vmem_limit),
    )(x2, cw_b)


# ----------------------------------------------------------------------------
# Parameter init (matches nn.Module shapes) and tiny glue branches
# ----------------------------------------------------------------------------
def init_tam_params(in_channels, n_segment, kernel_size, key):
    c, t, K = in_channels, n_segment, kernel_size
    c4 = c // 4
    k1, k2, k3, k4 = jax.random.split(key, 4)
    return {
        # G: Linear(t, 2t, no bias) -> BN1d(2t) -> ReLU -> Linear(2t, K) -> Softmax
        "G_w1": jax.random.normal(k1, (2 * t, t), jnp.float32) / jnp.sqrt(t),
        "G_w2": jax.random.normal(k2, (K, 2 * t), jnp.float32) / jnp.sqrt(2 * t),
        "G_bn_gamma": jnp.ones((2 * t,), jnp.float32),
        "G_bn_beta": jnp.zeros((2 * t,), jnp.float32),
        "G_bn_mean": jnp.zeros((2 * t,), jnp.float32),
        "G_bn_var": jnp.ones((2 * t,), jnp.float32),
        # L: Conv1d(c, c/4, K) -> BN1d(c/4) -> ReLU -> Conv1d(c/4, c, 1) -> Sigmoid
        "L_w1": jax.random.normal(k3, (c4, c, K), jnp.float32) / jnp.sqrt(c * K),
        "L_w2": jax.random.normal(k4, (c, c4, 1), jnp.float32) / jnp.sqrt(c4),
        "L_bn_gamma": jnp.ones((c4,), jnp.float32),
        "L_bn_beta": jnp.zeros((c4,), jnp.float32),
        "L_bn_mean": jnp.zeros((c4,), jnp.float32),
        "L_bn_var": jnp.ones((c4,), jnp.float32),
    }


def G_forward(pooled, p):                               # pooled: (n*c, t)
    z = pooled @ p["G_w1"].T                            # (n*c, 2t)
    z = (z - p["G_bn_mean"]) / jnp.sqrt(p["G_bn_var"] + EPS) * p["G_bn_gamma"] + p["G_bn_beta"]
    z = jax.nn.relu(z)
    z = z @ p["G_w2"].T                                 # (n*c, K)
    return jax.nn.softmax(z, axis=-1)


def L_forward(y, p, K):                                 # y: (n, c, t)
    z = lax.conv_general_dilated(
        y, p["L_w1"], window_strides=(1,), padding=[(K // 2, K // 2)],
        dimension_numbers=("NCH", "OIH", "NCH"))        # (n, c/4, t)
    g, b = p["L_bn_gamma"][None, :, None], p["L_bn_beta"][None, :, None]
    m, v = p["L_bn_mean"][None, :, None], p["L_bn_var"][None, :, None]
    z = (z - m) / jnp.sqrt(v + EPS) * g + b
    z = jax.nn.relu(z)
    z = lax.conv_general_dilated(
        z, p["L_w2"], window_strides=(1,), padding=[(0, 0)],
        dimension_numbers=("NCH", "OIH", "NCH"))        # (n, c, t)
    return jax.nn.sigmoid(z)


# ----------------------------------------------------------------------------
# Full TAM forward (Pallas hot path + tiny JAX glue)
# ----------------------------------------------------------------------------
def tam_forward(x, params, n_segment, kernel_size=3, stride=1, padding=1):
    nt, c, h, w = x.shape
    t = n_segment
    n = nt // t
    HW = h * w
    K, P, S = kernel_size, padding, stride
    T_out = (t + 2 * P - K) // S + 1
    itemsize = jnp.dtype(x.dtype).itemsize

    BLK_C = _choose_blk_c(c, t, T_out, HW, K, itemsize, n)
    G_ = c // BLK_C

    # Free reshape only: (n*t, c, h, w) -> (n*t, c, h*w).  No transpose, no cast;
    # bf16 inputs stay bf16 in HBM and are upcast inside the kernels.
    x2 = x.reshape(nt, c, HW)

    # Pallas: blocked spatial mean pooling.
    pooled = spatial_mean(x2, n=n, c=c, t=t, HW=HW, BLK_C=BLK_C)   # (n, G_, t, BLK_C)
    pooled_nct = pooled.transpose(0, 1, 3, 2).reshape(n * c, t)    # tiny

    # Tiny descriptor branches.
    conv_w = G_forward(pooled_nct, params)                          # (n*c, K)
    local_act = L_forward(pooled_nct.reshape(n, c, t), params, K)   # (n, c, t)

    # Fold local activation + dynamic taps into per-(t_out, tap) coefficients
    # (tiny tensor), zeroed outside the temporal padding range.
    w_nck = conv_w.reshape(n, c, K)
    to_idx = jnp.arange(T_out)[:, None]                 # (T_out, 1)
    k_idx = jnp.arange(K)[None, :]                      # (1, K)
    ts = to_idx * S + k_idx - P                         # (T_out, K)
    valid = ((ts >= 0) & (ts < t)).astype(jnp.float32)
    tsc = jnp.clip(ts, 0, t - 1)
    act_g = local_act[:, :, tsc]                        # (n, c, T_out, K)
    cw = w_nck[:, :, None, :] * act_g * valid[None, None]
    cw_b = cw.reshape(n, G_, BLK_C, T_out * K).astype(jnp.float32)

    # Pallas: fused modulation + depthwise temporal conv, output already in the
    # final (n*t_out, c, hw) layout -> only a free reshape remains.
    out2 = mod_temporal_conv(x2, cw_b, n=n, c=c, t=t, HW=HW,
                             K=K, P=P, S=S, T_out=T_out, BLK_C=BLK_C)
    return out2.reshape(n * T_out, c, h, w)


# ----------------------------------------------------------------------------
# Pure-JAX reference (original op order: modulate, then zero-padded conv)
# ----------------------------------------------------------------------------
def tam_reference(x, params, n_segment, kernel_size=3, stride=1, padding=1):
    nt, c, h, w = x.shape
    t, K, P, S = n_segment, kernel_size, padding, stride
    n = nt // t
    new_x = x.reshape(n, t, c, h, w).transpose(0, 2, 1, 3, 4).astype(jnp.float32)
    pooled = new_x.mean(axis=(3, 4)).reshape(n * c, t)
    ck = G_forward(pooled, params)                               # (n*c, K)
    la = L_forward(pooled.reshape(n, c, t), params, K).reshape(n * c, t)
    xm = new_x.reshape(n * c, t, h * w) * la[:, :, None]
    xpad = jnp.pad(xm, ((0, 0), (P, P), (0, 0)))
    t_out = (t + 2 * P - K) // S + 1
    out = sum(ck[:, k][:, None, None] *
              xpad[:, k:k + (t_out - 1) * S + 1:S] for k in range(K))
    return (out.reshape(n, c, t_out, h, w)
               .transpose(0, 2, 1, 3, 4)
               .reshape(n * t_out, c, h, w)).astype(x.dtype)


if __name__ == "__main__":
    key = jax.random.PRNGKey(0)
    kx, kp = jax.random.split(key)

    # small but representative: 2 clips, t=8 segments, c=8 channels, 16x16
    n_batch, t, c, h, w = 2, 8, 8, 16, 16
    K, stride, P = 3, 1, 1

    x = jax.random.normal(kx, (n_batch * t, c, h, w), jnp.float32)
    params = init_tam_params(c, t, K, kp)

    fwd = jax.jit(lambda xx: tam_forward(xx, params, t, K, stride, P))
    out = jax.block_until_ready(fwd(x))

    ref = tam_reference(x, params, t, K, stride, P)
    assert out.shape == x.shape, (out.shape, x.shape)
    max_err = float(jnp.max(jnp.abs(out - ref)))
    assert jnp.allclose(out, ref, rtol=1e-4, atol=1e-4), f"max_err={max_err}"

    print("KERNEL_OK")
</pallas_src>

<mosaic_0001>
module attributes {stable_mosaic.version = 11 : i64} {
  func.func @_pool_kernel(%arg0: i32, %arg1: i32, %arg2: memref<8x8x256xf32, #tpu.memory_space<vmem>>, %arg3: memref<1x1x8x8xf32, #tpu.memory_space<vmem>>) attributes {dimension_semantics = [#tpu.dimension_semantics<parallel>, #tpu.dimension_semantics<parallel>], iteration_bounds = array<i64: 2, 1>, scalar_prefetch = 0 : i64, scratch_operands = 0 : i64, tpu.core_type = #tpu.core_type<tc>, window_params = [{transform_indices = @transform_0, window_bounds = array<i64: 8, 8, 256>}, {transform_indices = @transform_1, window_bounds = array<i64: 1, 1, 8, 8>}]} {
    %c0 = arith.constant 0 : index
    %c0_0 = arith.constant 0 : index
    %c0_1 = arith.constant 0 : index
    %0 = vector.load %arg2[%c0, %c0_0, %c0_1] : memref<8x8x256xf32, #tpu.memory_space<vmem>>, vector<8x8x256xf32>
    %cst = arith.constant dense<0.000000e+00> : vector<8x8xf32>
    %1 = vector.multi_reduction <add>, %0, %cst [2] : vector<8x8x256xf32> to vector<8x8xf32>
    %cst_2 = arith.constant 2.560000e+02 : f32
    %2 = vector.broadcast %cst_2 : f32 to vector<8x8xf32>
    %3 = arith.divf %1, %2 : vector<8x8xf32>
    %c0_3 = arith.constant 0 : index
    %c0_4 = arith.constant 0 : index
    %c0_5 = arith.constant 0 : index
    %c0_6 = arith.constant 0 : index
    %4 = vector.load %arg3[%c0_3, %c0_4, %c0_5, %c0_6] : memref<1x1x8x8xf32, #tpu.memory_space<vmem>>, vector<1x1x8x8xf32>
    %5 = vector.shape_cast %4 : vector<1x1x8x8xf32> to vector<8x8xf32>
    %6 = vector.shape_cast %3 : vector<8x8xf32> to vector<1x1x8x8xf32>
    tpu.vector_store %arg3[%c0_3, %c0_4, %c0_5, %c0_6], %6 {strides = array<i32>} : memref<1x1x8x8xf32, #tpu.memory_space<vmem>>, vector<1x1x8x8xf32>,
    return
  }
  func.func @transform_0(%arg0: i32, %arg1: i32) -> (i32, i32, i32) {
    %c0_i32 = arith.constant 0 : i32
    %c0_i32_0 = arith.constant 0 : i32
    return %arg0, %arg1, %c0_i32 : i32, i32, i32
  }
  func.func @transform_1(%arg0: i32, %arg1: i32) -> (i32, i32, i32, i32) {
    %c0_i32 = arith.constant 0 : i32
    %c0_i32_0 = arith.constant 0 : i32
    %c0_i32_1 = arith.constant 0 : i32
    return %arg0, %arg1, %c0_i32, %c0_i32_0 : i32, i32, i32, i32
  }
}

module attributes {stable_mosaic.version = 11 : i64} {
  func.func @kernel(%arg0: i32, %arg1: i32, %arg2: memref<8x8x256xf32, #tpu.memory_space<vmem>>, %arg3: memref<1x1x8x24xf32, #tpu.memory_space<vmem>>, %arg4: memref<8x8x256xf32, #tpu.memory_space<vmem>>) attributes {dimension_semantics = [#tpu.dimension_semantics<parallel>, #tpu.dimension_semantics<parallel>], iteration_bounds = array<i64: 2, 1>, scalar_prefetch = 0 : i64, scratch_operands = 0 : i64, tpu.core_type = #tpu.core_type<tc>, window_params = [{transform_indices = @transform_0, window_bounds = array<i64: 8, 8, 256>}, {transform_indices = @transform_1, window_bounds = array<i64: 1, 1, 8, 24>}, {transform_indices = @transform_2, window_bounds = array<i64: 8, 8, 256>}]} {
    %c0 = arith.constant 0 : index
    %c0_0 = arith.constant 0 : index
    %c0_1 = arith.constant 0 : index
    %c0_2 = arith.constant 0 : index
    %0 = vector.load %arg3[%c0, %c0_0, %c0_1, %c0_2] : memref<1x1x8x24xf32, #tpu.memory_space<vmem>>, vector<1x1x8x24xf32>
    %1 = vector.shape_cast %0 : vector<1x1x8x24xf32> to vector<8x24xf32>
    %2 = vector.extract_strided_slice %1 {offsets = [0, 1], sizes = [8, 1], strides = [1, 1]} : vector<8x24xf32> to vector<8x1xf32>
    %c0_3 = arith.constant 0 : index
    %c0_4 = arith.constant 0 : index
    %c0_5 = arith.constant 0 : index
    %3 = vector.load %arg2[%c0_3, %c0_4, %c0_5] : memref<8x8x256xf32, #tpu.memory_space<vmem>>, vector<1x8x256xf32>
    %4 = vector.shape_cast %3 : vector<1x8x256xf32> to vector<8x256xf32>
    %5 = vector.broadcast %2 : vector<8x1xf32> to vector<8x256xf32>
    %6 = arith.mulf %4, %5 : vector<8x256xf32>
    %7 = vector.extract_strided_slice %1 {offsets = [0, 2], sizes = [8, 1], strides = [1, 1]} : vector<8x24xf32> to vector<8x1xf32>
    %c1 = arith.constant 1 : index
    %c0_6 = arith.constant 0 : index
    %c0_7 = arith.constant 0 : index
    %8 = vector.load %arg2[%c1, %c0_6, %c0_7] : memref<8x8x256xf32, #tpu.memory_space<vmem>>, vector<1x8x256xf32>
    %9 = vector.shape_cast %8 : vector<1x8x256xf32> to vector<8x256xf32>
    %10 = vector.broadcast %7 : vector<8x1xf32> to vector<8x256xf32>
    %11 = arith.mulf %9, %10 : vector<8x256xf32>
    %12 = arith.addf %6, %11 : vector<8x256xf32>
    %c0_8 = arith.constant 0 : index
    %c0_9 = arith.constant 0 : index
    %c0_10 = arith.constant 0 : index
    %13 = vector.load %arg4[%c0_8, %c0_9, %c0_10] : memref<8x8x256xf32, #tpu.memory_space<vmem>>, vector<1x8x256xf32>
    %14 = vector.shape_cast %13 : vector<1x8x256xf32> to vector<8x256xf32>
    %15 = vector.shape_cast %12 : vector<8x256xf32> to vector<1x8x256xf32>
    tpu.vector_store %arg4[%c0_8, %c0_9, %c0_10], %15 {strides = array<i32>} : memref<8x8x256xf32, #tpu.memory_space<vmem>>, vector<1x8x256xf32>,
    %16 = vector.extract_strided_slice %1 {offsets = [0, 3], sizes = [8, 1], strides = [1, 1]} : vector<8x24xf32> to vector<8x1xf32>
    %c0_11 = arith.constant 0 : index
    %c0_12 = arith.constant 0 : index
    %c0_13 = arith.constant 0 : index
    %17 = vector.load %arg2[%c0_11, %c0_12, %c0_13] : memref<8x8x256xf32, #tpu.memory_space<vmem>>, vector<1x8x256xf32>
    %18 = vector.shape_cast %17 : vector<1x8x256xf32> to vector<8x256xf32>
    %19 = vector.broadcast %16 : vector<8x1xf32> to vector<8x256xf32>
    %20 = arith.mulf %18, %19 : vector<8x256xf32>
    %21 = vector.extract_strided_slice %1 {offsets = [0, 4], sizes = [8, 1], strides = [1, 1]} : vector<8x24xf32> to vector<8x1xf32>
    %c1_14 = arith.constant 1 : index
    %c0_15 = arith.constant 0 : index
    %c0_16 = arith.constant 0 : index
    %22 = vector.load %arg2[%c1_14, %c0_15, %c0_16] : memref<8x8x256xf32, #tpu.memory_space<vmem>>, vector<1x8x256xf32>
    %23 = vector.shape_cast %22 : vector<1x8x256xf32> to vector<8x256xf32>
    %24 = vector.broadcast %21 : vector<8x1xf32> to vector<8x256xf32>
    %25 = arith.mulf %23, %24 : vector<8x256xf32>
    %26 = arith.addf %20, %25 : vector<8x256xf32>
    %27 = vector.extract_strided_slice %1 {offsets = [0, 5], sizes = [8, 1], strides = [1, 1]} : vector<8x24xf32> to vector<8x1xf32>
    %c2 = arith.constant 2 : index
    %c0_17 = arith.constant 0 : index
    %c0_18 = arith.constant 0 : index
    %28 = vector.load %arg2[%c2, %c0_17, %c0_18] : memref<8x8x256xf32, #tpu.memory_space<vmem>>, vector<1x8x256xf32>
    %29 = vector.shape_cast %28 : vector<1x8x256xf32> to vector<8x256xf32>
    %30 = vector.broadcast %27 : vector<8x1xf32> to vector<8x256xf32>
    %31 = arith.mulf %29, %30 : vector<8x256xf32>
    %32 = arith.addf %26, %31 : vector<8x256xf32>
    %c1_19 = arith.constant 1 : index
    %c0_20 = arith.constant 0 : index
    %c0_21 = arith.constant 0 : index
    %33 = vector.load %arg4[%c1_19, %c0_20, %c0_21] : memref<8x8x256xf32, #tpu.memory_space<vmem>>, vector<1x8x256xf32>
    %34 = vector.shape_cast %33 : vector<1x8x256xf32> to vector<8x256xf32>
    %35 = vector.shape_cast %32 : vector<8x256xf32> to vector<1x8x256xf32>
    tpu.vector_store %arg4[%c1_19, %c0_20, %c0_21], %35 {strides = array<i32>} : memref<8x8x256xf32, #tpu.memory_space<vmem>>, vector<1x8x256xf32>,
    %36 = vector.extract_strided_slice %1 {offsets = [0, 6], sizes = [8, 1], strides = [1, 1]} : vector<8x24xf32> to vector<8x1xf32>
    %c1_22 = arith.constant 1 : index
    %c0_23 = arith.constant 0 : index
    %c0_24 = arith.constant 0 : index
    %37 = vector.load %arg2[%c1_22, %c0_23, %c0_24] : memref<8x8x256xf32, #tpu.memory_space<vmem>>, vector<1x8x256xf32>
    %38 = vector.shape_cast %37 : vector<1x8x256xf32> to vector<8x256xf32>
    %39 = vector.broadcast %36 : vector<8x1xf32> to vector<8x256xf32>
    %40 = arith.mulf %38, %39 : vector<8x256xf32>
    %41 = vector.extract_strided_slice %1 {offsets = [0, 7], sizes = [8, 1], strides = [1, 1]} : vector<8x24xf32> to vector<8x1xf32>
    %c2_25 = arith.constant 2 : index
    %c0_26 = arith.constant 0 : index
    %c0_27 = arith.constant 0 : index
    %42 = vector.load %arg2[%c2_25, %c0_26, %c0_27] : memref<8x8x256xf32, #tpu.memory_space<vmem>>, vector<1x8x256xf32>
    %43 = vector.shape_cast %42 : vector<1x8x256xf32> to vector<8x256xf32>
    %44 = vector.broadcast %41 : vector<8x1xf32> to vector<8x256xf32>
    %45 = arith.mulf %43, %44 : vector<8x256xf32>
    %46 = arith.addf %40, %45 : vector<8x256xf32>
    %47 = vector.extract_strided_slice %1 {offsets = [0, 8], sizes = [8, 1], strides = [1, 1]} : vector<8x24xf32> to vector<8x1xf32>
    %c3 = arith.constant 3 : index
    %c0_28 = arith.constant 0 : index
    %c0_29 = arith.constant 0 : index
    %48 = vector.load %arg2[%c3, %c0_28, %c0_29] : memref<8x8x256xf32, #tpu.memory_space<vmem>>, vector<1x8x256xf32>
    %49 = vector.shape_cast %48 : vector<1x8x256xf32> to vector<8x256xf32>
    %50 = vector.broadcast %47 : vector<8x1xf32> to vector<8x256xf32>
    %51 = arith.mulf %49, %50 : vector<8x256xf32>
    %52 = arith.addf %46, %51 : vector<8x256xf32>
    %c2_30 = arith.constant 2 : index
    %c0_31 = arith.constant 0 : index
    %c0_32 = arith.constant 0 : index
    %53 = vector.load %arg4[%c2_30, %c0_31, %c0_32] : memref<8x8x256xf32, #tpu.memory_space<vmem>>, vector<1x8x256xf32>
    %54 = vector.shape_cast %53 : vector<1x8x256xf32> to vector<8x256xf32>
    %55 = vector.shape_cast %52 : vector<8x256xf32> to vector<1x8x256xf32>
    tpu.vector_store %arg4[%c2_30, %c0_31, %c0_32], %55 {strides = array<i32>} : memref<8x8x256xf32, #tpu.memory_space<vmem>>, vector<1x8x256xf32>,
    %56 = vector.extract_strided_slice %1 {offsets = [0, 9], sizes = [8, 1], strides = [1, 1]} : vector<8x24xf32> to vector<8x1xf32>
    %c2_33 = arith.constant 2 : index
    %c0_34 = arith.constant 0 : index
    %c0_35 = arith.constant 0 : index
    %57 = vector.load %arg2[%c2_33, %c0_34, %c0_35] : memref<8x8x256xf32, #tpu.memory_space<vmem>>, vector<1x8x256xf32>
    %58 = vector.shape_cast %57 : vector<1x8x256xf32> to vector<8x256xf32>
    %59 = vector.broadcast %56 : vector<8x1xf32> to vector<8x256xf32>
    %60 = arith.mulf %58, %59 : vector<8x256xf32>
    %61 = vector.extract_strided_slice %1 {offsets = [0, 10], sizes = [8, 1], strides = [1, 1]} : vector<8x24xf32> to vector<8x1xf32>
    %c3_36 = arith.constant 3 : index
    %c0_37 = arith.constant 0 : index
    %c0_38 = arith.constant 0 : index
    %62 = vector.load %arg2[%c3_36, %c0_37, %c0_38] : memref<8x8x256xf32, #tpu.memory_space<vmem>>, vector<1x8x256xf32>
    %63 = vector.shape_cast %62 : vector<1x8x256xf32> to vector<8x256xf32>
    %64 = vector.broadcast %61 : vector<8x1xf32> to vector<8x256xf32>
    %65 = arith.mulf %63, %64 : vector<8x256xf32>
    %66 = arith.addf %60, %65 : vector<8x256xf32>
    %67 = vector.extract_strided_slice %1 {offsets = [0, 11], sizes = [8, 1], strides = [1, 1]} : vector<8x24xf32> to vector<8x1xf32>
    %c4 = arith.constant 4 : index
    %c0_39 = arith.constant 0 : index
    %c0_40 = arith.constant 0 : index
    %68 = vector.load %arg2[%c4, %c0_39, %c0_40] : memref<8x8x256xf32, #tpu.memory_space<vmem>>, vector<1x8x256xf32>
    %69 = vector.shape_cast %68 : vector<1x8x256xf32> to vector<8x256xf32>
    %70 = vector.broadcast %67 : vector<8x1xf32> to vector<8x256xf32>
    %71 = arith.mulf %69, %70 : vector<8x256xf32>
    %72 = arith.addf %66, %71 : vector<8x256xf32>
    %c3_41 = arith.constant 3 : index
    %c0_42 = arith.constant 0 : index
    %c0_43 = arith.constant 0 : index
    %73 = vector.load %arg4[%c3_41, %c0_42, %c0_43] : memref<8x8x256xf32, #tpu.memory_space<vmem>>, vector<1x8x256xf32>
    %74 = vector.shape_cast %73 : vector<1x8x256xf32> to vector<8x256xf32>
    %75 = vector.shape_cast %72 : vector<8x256xf32> to vector<1x8x256xf32>
    tpu.vector_store %arg4[%c3_41, %c0_42, %c0_43], %75 {strides = array<i32>} : memref<8x8x256xf32, #tpu.memory_space<vmem>>, vector<1x8x256xf32>,
    %76 = vector.extract_strided_slice %1 {offsets = [0, 12], sizes = [8, 1], strides = [1, 1]} : vector<8x24xf32> to vector<8x1xf32>
    %c3_44 = arith.constant 3 : index
    %c0_45 = arith.constant 0 : index
    %c0_46 = arith.constant 0 : index
    %77 = vector.load %arg2[%c3_44, %c0_45, %c0_46] : memref<8x8x256xf32, #tpu.memory_space<vmem>>, vector<1x8x256xf32>
    %78 = vector.shape_cast %77 : vector<1x8x256xf32> to vector<8x256xf32>
    %79 = vector.broadcast %76 : vector<8x1xf32> to vector<8x256xf32>
    %80 = arith.mulf %78, %79 : vector<8x256xf32>
    %81 = vector.extract_strided_slice %1 {offsets = [0, 13], sizes = [8, 1], strides = [1, 1]} : vector<8x24xf32> to vector<8x1xf32>
    %c4_47 = arith.constant 4 : index
    %c0_48 = arith.constant 0 : index
    %c0_49 = arith.constant 0 : index
    %82 = vector.load %arg2[%c4_47, %c0_48, %c0_49] : memref<8x8x256xf32, #tpu.memory_space<vmem>>, vector<1x8x256xf32>
    %83 = vector.shape_cast %82 : vector<1x8x256xf32> to vector<8x256xf32>
    %84 = vector.broadcast %81 : vector<8x1xf32> to vector<8x256xf32>
    %85 = arith.mulf %83, %84 : vector<8x256xf32>
    %86 = arith.addf %80, %85 : vector<8x256xf32>
    %87 = vector.extract_strided_slice %1 {offsets = [0, 14], sizes = [8, 1], strides = [1, 1]} : vector<8x24xf32> to vector<8x1xf32>
    %c5 = arith.constant 5 : index
    %c0_50 = arith.constant 0 : index
    %c0_51 = arith.constant 0 : index
    %88 = vector.load %arg2[%c5, %c0_50, %c0_51] : memref<8x8x256xf32, #tpu.memory_space<vmem>>, vector<1x8x256xf32>
    %89 = vector.shape_cast %88 : vector<1x8x256xf32> to vector<8x256xf32>
    %90 = vector.broadcast %87 : vector<8x1xf32> to vector<8x256xf32>
    %91 = arith.mulf %89, %90 : vector<8x256xf32>
    %92 = arith.addf %86, %91 : vector<8x256xf32>
    %c4_52 = arith.constant 4 : index
    %c0_53 = arith.constant 0 : index
    %c0_54 = arith.constant 0 : index
    %93 = vector.load %arg4[%c4_52, %c0_53, %c0_54] : memref<8x8x256xf32, #tpu.memory_space<vmem>>, vector<1x8x256xf32>
    %94 = vector.shape_cast %93 : vector<1x8x256xf32> to vector<8x256xf32>
    %95 = vector.shape_cast %92 : vector<8x256xf32> to vector<1x8x256xf32>
    tpu.vector_store %arg4[%c4_52, %c0_53, %c0_54], %95 {strides = array<i32>} : memref<8x8x256xf32, #tpu.memory_space<vmem>>, vector<1x8x256xf32>,
    %96 = vector.extract_strided_slice %1 {offsets = [0, 15], sizes = [8, 1], strides = [1, 1]} : vector<8x24xf32> to vector<8x1xf32>
    %c4_55 = arith.constant 4 : index
    %c0_56 = arith.constant 0 : index
    %c0_57 = arith.constant 0 : index
    %97 = vector.load %arg2[%c4_55, %c0_56, %c0_57] : memref<8x8x256xf32, #tpu.memory_space<vmem>>, vector<1x8x256xf32>
    %98 = vector.shape_cast %97 : vector<1x8x256xf32> to vector<8x256xf32>
    %99 = vector.broadcast %96 : vector<8x1xf32> to vector<8x256xf32>
    %100 = arith.mulf %98, %99 : vector<8x256xf32>
    %101 = vector.extract_strided_slice %1 {offsets = [0, 16], sizes = [8, 1], strides = [1, 1]} : vector<8x24xf32> to vector<8x1xf32>
    %c5_58 = arith.constant 5 : index
    %c0_59 = arith.constant 0 : index
    %c0_60 = arith.constant 0 : index
    %102 = vector.load %arg2[%c5_58, %c0_59, %c0_60] : memref<8x8x256xf32, #tpu.memory_space<vmem>>, vector<1x8x256xf32>
    %103 = vector.shape_cast %102 : vector<1x8x256xf32> to vector<8x256xf32>
    %104 = vector.broadcast %101 : vector<8x1xf32> to vector<8x256xf32>
    %105 = arith.mulf %103, %104 : vector<8x256xf32>
    %106 = arith.addf %100, %105 : vector<8x256xf32>
    %107 = vector.extract_strided_slice %1 {offsets = [0, 17], sizes = [8, 1], strides = [1, 1]} : vector<8x24xf32> to vector<8x1xf32>
    %c6 = arith.constant 6 : index
    %c0_61 = arith.constant 0 : index
    %c0_62 = arith.constant 0 : index
    %108 = vector.load %arg2[%c6, %c0_61, %c0_62] : memref<8x8x256xf32, #tpu.memory_space<vmem>>, vector<1x8x256xf32>
    %109 = vector.shape_cast %108 : vector<1x8x256xf32> to vector<8x256xf32>
    %110 = vector.broadcast %107 : vector<8x1xf32> to vector<8x256xf32>
    %111 = arith.mulf %109, %110 : vector<8x256xf32>
    %112 = arith.addf %106, %111 : vector<8x256xf32>
    %c5_63 = arith.constant 5 : index
    %c0_64 = arith.constant 0 : index
    %c0_65 = arith.constant 0 : index
    %113 = vector.load %arg4[%c5_63, %c0_64, %c0_65] : memref<8x8x256xf32, #tpu.memory_space<vmem>>, vector<1x8x256xf32>
    %114 = vector.shape_cast %113 : vector<1x8x256xf32> to vector<8x256xf32>
    %115 = vector.shape_cast %112 : vector<8x256xf32> to vector<1x8x256xf32>
    tpu.vector_store %arg4[%c5_63, %c0_64, %c0_65], %115 {strides = array<i32>} : memref<8x8x256xf32, #tpu.memory_space<vmem>>, vector<1x8x256xf32>,
    %116 = vector.extract_strided_slice %1 {offsets = [0, 18], sizes = [8, 1], strides = [1, 1]} : vector<8x24xf32> to vector<8x1xf32>
    %c5_66 = arith.constant 5 : index
    %c0_67 = arith.constant 0 : index
    %c0_68 = arith.constant 0 : index
    %117 = vector.load %arg2[%c5_66, %c0_67, %c0_68] : memref<8x8x256xf32, #tpu.memory_space<vmem>>, vector<1x8x256xf32>
    %118 = vector.shape_cast %117 : vector<1x8x256xf32> to vector<8x256xf32>
    %119 = vector.broadcast %116 : vector<8x1xf32> to vector<8x256xf32>
    %120 = arith.mulf %118, %119 : vector<8x256xf32>
    %121 = vector.extract_strided_slice %1 {offsets = [0, 19], sizes = [8, 1], strides = [1, 1]} : vector<8x24xf32> to vector<8x1xf32>
    %c6_69 = arith.constant 6 : index
    %c0_70 = arith.constant 0 : index
    %c0_71 = arith.constant 0 : index
    %122 = vector.load %arg2[%c6_69, %c0_70, %c0_71] : memref<8x8x256xf32, #tpu.memory_space<vmem>>, vector<1x8x256xf32>
    %123 = vector.shape_cast %122 : vector<1x8x256xf32> to vector<8x256xf32>
    %124 = vector.broadcast %121 : vector<8x1xf32> to vector<8x256xf32>
    %125 = arith.mulf %123, %124 : vector<8x256xf32>
    %126 = arith.addf %120, %125 : vector<8x256xf32>
    %127 = vector.extract_strided_slice %1 {offsets = [0, 20], sizes = [8, 1], strides = [1, 1]} : vector<8x24xf32> to vector<8x1xf32>
    %c7 = arith.constant 7 : index
    %c0_72 = arith.constant 0 : index
    %c0_73 = arith.constant 0 : index
    %128 = vector.load %arg2[%c7, %c0_72, %c0_73] : memref<8x8x256xf32, #tpu.memory_space<vmem>>, vector<1x8x256xf32>
    %129 = vector.shape_cast %128 : vector<1x8x256xf32> to vector<8x256xf32>
    %130 = vector.broadcast %127 : vector<8x1xf32> to vector<8x256xf32>
    %131 = arith.mulf %129, %130 : vector<8x256xf32>
    %132 = arith.addf %126, %131 : vector<8x256xf32>
    %c6_74 = arith.constant 6 : index
    %c0_75 = arith.constant 0 : index
    %c0_76 = arith.constant 0 : index
    %133 = vector.load %arg4[%c6_74, %c0_75, %c0_76] : memref<8x8x256xf32, #tpu.memory_space<vmem>>, vector<1x8x256xf32>
    %134 = vector.shape_cast %133 : vector<1x8x256xf32> to vector<8x256xf32>
    %135 = vector.shape_cast %132 : vector<8x256xf32> to vector<1x8x256xf32>
    tpu.vector_store %arg4[%c6_74, %c0_75, %c0_76], %135 {strides = array<i32>} : memref<8x8x256xf32, #tpu.memory_space<vmem>>, vector<1x8x256xf32>,
    %136 = vector.extract_strided_slice %1 {offsets = [0, 21], sizes = [8, 1], strides = [1, 1]} : vector<8x24xf32> to vector<8x1xf32>
    %c6_77 = arith.constant 6 : index
    %c0_78 = arith.constant 0 : index
    %c0_79 = arith.constant 0 : index
    %137 = vector.load %arg2[%c6_77, %c0_78, %c0_79] : memref<8x8x256xf32, #tpu.memory_space<vmem>>, vector<1x8x256xf32>
    %138 = vector.shape_cast %137 : vector<1x8x256xf32> to vector<8x256xf32>
    %139 = vector.broadcast %136 : vector<8x1xf32> to vector<8x256xf32>
    %140 = arith.mulf %138, %139 : vector<8x256xf32>
    %141 = vector.extract_strided_slice %1 {offsets = [0, 22], sizes = [8, 1], strides = [1, 1]} : vector<8x24xf32> to vector<8x1xf32>
    %c7_80 = arith.constant 7 : index
    %c0_81 = arith.constant 0 : index
    %c0_82 = arith.constant 0 : index
    %142 = vector.load %arg2[%c7_80, %c0_81, %c0_82] : memref<8x8x256xf32, #tpu.memory_space<vmem>>, vector<1x8x256xf32>
    %143 = vector.shape_cast %142 : vector<1x8x256xf32> to vector<8x256xf32>
    %144 = vector.broadcast %141 : vector<8x1xf32> to vector<8x256xf32>
    %145 = arith.mulf %143, %144 : vector<8x256xf32>
    %146 = arith.addf %140, %145 : vector<8x256xf32>
    %c7_83 = arith.constant 7 : index
    %c0_84 = arith.constant 0 : index
    %c0_85 = arith.constant 0 : index
    %147 = vector.load %arg4[%c7_83, %c0_84, %c0_85] : memref<8x8x256xf32, #tpu.memory_space<vmem>>, vector<1x8x256xf32>
    %148 = vector.shape_cast %147 : vector<1x8x256xf32> to vector<8x256xf32>
    %149 = vector.shape_cast %146 : vector<8x256xf32> to vector<1x8x256xf32>
    tpu.vector_store %arg4[%c7_83, %c0_84, %c0_85], %149 {strides = array<i32>} : memref<8x8x256xf32, #tpu.memory_space<vmem>>, vector<1x8x256xf32>,
    return
  }
  func.func @transform_0(%arg0: i32, %arg1: i32) -> (i32, i32, i32) {
    %c0_i32 = arith.constant 0 : i32
    %c0_i32_0 = arith.constant 0 : i32
    return %arg0, %arg1, %c0_i32 : i32, i32, i32
  }
  func.func @transform_1(%arg0: i32, %arg1: i32) -> (i32, i32, i32, i32) {
    %c0_i32 = arith.constant 0 : i32
    %c0_i32_0 = arith.constant 0 : i32
    %c0_i32_1 = arith.constant 0 : i32
    return %arg0, %arg1, %c0_i32, %c0_i32_0 : i32, i32, i32, i32
  }
  func.func @transform_2(%arg0: i32, %arg1: i32) -> (i32, i32, i32) {
    %c0_i32 = arith.constant 0 : i32
    %c0_i32_0 = arith.constant 0 : i32
    return %arg0, %arg1, %c0_i32 : i32, i32, i32
  }
}

</mosaic_0001>

<llo_original>
// kernel: mul.9
$region0: #{mul.9}
  %s0 = inlined_call_operand.vmem [shape: f32[16,3], index: 0, kind: input, shape index: {}]
  %s1 = inlined_call_operand.vmem [shape: f32[2,8,3], index: 1, kind: output, shape index: {}]
  $region1: #{mul.9} parent=0
    #allocation0 [shape = 'u8[12288]{0}', space=vmem, size = 0x3000, scoped, tag = 'scoped mem for output reshape']
    #allocation1 [shape = 'u8[4096]{0}', space=vmem, size = 0x1000, scoped, tag = 'scoped mem for input reshape']
    %s3 = sshllo.u32 0, 4
    %v4 = vld [vmem:[%s0] sm:%s3]
    %5 = vst [vmem:[#allocation1] sm:%s3] %v4
    %v6 = vld [vmem:[#allocation1] sm:$0x7]
    %vm7 = vcmask 64512
    %8 = vst.msk [vmem:[#allocation0] ss:$8 sm:$0x7] %vm7, %v6
    %v9 = vld [vmem:[#allocation1] sm:$0x7]
    %10 = vrot.lane.b32.xlu0 %v9, 120
    %v11 = vpop.permute.xlu0 %10
    %vm12 = vcmask 64512
    %s13 = scalar_lea.vmem [#allocation0], 1
    %14 = vst.msk [vmem:[%s13] ss:$8 sm:$0x7] %vm12, %v11
    %s16 = sshllo.u32 0, 2
    %v18 = vld [vmem:[#allocation0] sm:%s16]
    %s19 = sshllo.u32 0, 2
    %20 = vst [vmem:[%s1] sm:%s19] %v18
    %s21 = scalar_lea.vmem [#allocation0], 8
    %v22 = vld [vmem:[%s21] sm:%s16]
    %s23 = sshllo.u32 0, 2
    %s24 = scalar_lea.vmem %s1, 2
    %25 = vst [vmem:[%s24] sm:%s23] %v22
    %s26 = scalar_lea.vmem [#allocation0], 16
    %v27 = vld [vmem:[%s26] sm:%s16]
    %s28 = sshllo.u32 0, 2
    %s29 = smul.addr 2, 2
    %s30 = scalar_lea.vmem %s1, %s29
    %31 = vst [vmem:[%s30] sm:%s28] %v27

// kernel: _lambda_.2
$region0: #{_lambda_.2}
  #allocation0 [shape = 'u32[]', space=smem, size = 0x4, offset = 0x4, fixed_abs, tag = 'smem constant byte address 0x4 - core index']
  #allocation1 [shape = 'u32[144,128]{1,0:T(1,128)}', space=vmem, size = 0x12000, scoped, tag = 'internal scratch']
  %s0 = inlined_call_operand.vmem [shape: f32[16,8,256], index: 0, kind: input, shape index: {}]
  %s1 = inlined_call_operand.vmem [shape: f32[2,1,8,8], index: 1, kind: output, shape index: {}]
  %s2 = sld [smem:[#allocation0]]
  $region37: #{_lambda_.2} parent=0
    _
  %s4 = ssub.s32 1, %s2
  %s5 = scalar_select 0, %s4, %s2
  loop: start=0, step=1, limit=4
  $region2: #{_lambda_.2} parent=0 // loop_pre_header
    _
  $region3: #{_lambda_.2} parent=0 // loop_header
    %s7 = sphi 0, %s11
    %p8 = scmp.ge.s32.totalorder %s7, 4
    %s14 = sphi 0, %s26
    %s15 = sphi 0, %s22
    %s16 = sphi 0, %s14
    %s17 = sphi 0, %s15
    %s18 = sphi 0, %s16
    %s19 = sphi 0, %s17
    %s31 = sphi 0, %s33
    %s34 = sphi 0, %s31
    %s35 = sphi 0, %s34
    %s51 = sphi 0, %s35
    %s59 = sphi 0, %s61
    %s62 = sphi 0, %s59
    %s63 = sphi 0, %s62
    %s79 = sphi 0, %s63
  $region4: #{_lambda_.2} parent=0 // loop_header_branch
    %10 = sbr.rel (%p8) target = $region8
  $region5: #{_lambda_.2} parent=0 // loop_body
    %s12 = ssub.s32 %s7, 1
    %s13 = ssub.s32 %s7, 2
    %s20 = sadd.s32 1, %s15
    %p21 = scmp.ge.s32.totalorder %s20, 1
    %s22 = scalar_select %p21, 0, %s20
    %s23 = sadd.s32 1, %s14
    %s24 = scalar_select %p21, %s23, %s14
    %p25 = scmp.ge.s32.totalorder %s24, 2
    %s26 = scalar_select %p25, 0, %s24
    %s27 = ssub.s32 %s14, %s26
    %s28 = ssub.s32 %s15, %s22
    %s29 = sor.u32 %s27, %s28
    %p30 = scmp.eq.s32.totalorder %s29, 0
    %s32 = sadd.s32 %s31, 1
    %s33 = scalar_select %p30, %s31, %s32
    %p36 = pneg %p30
    %p37 = scmp.eq.s32.totalorder %s7, 1
    %p38 = por %p36, %p37
    %p39 = scmp.ne.s32.totalorder %s31, %s34
    %p40 = scmp.eq.s32.totalorder %s7, 0
    %p41 = por %p39, %p40
    %p42 = scmp.ne.s32.totalorder %s31, %s34
    %p43 = scmp.eq.s32.totalorder %s12, 1
    %p44 = por %p42, %p43
    %p45 = scmp.ne.s32.totalorder %s34, %s35
    %p46 = scmp.eq.s32.totalorder %s12, 0
    %p47 = por %p45, %p46
    %p48 = scmp.ne.s32.totalorder %s34, %s35
    %p49 = scmp.eq.s32.totalorder %s13, 1
    %p50 = por %p48, %p49
    %p52 = scmp.ne.s32.totalorder %s35, %s51
    %p53 = scmp.eq.s32.totalorder %s13, 0
    %p54 = por %p52, %p53
    %s55 = ssub.s32 %s14, %s26
    %s56 = ssub.s32 %s15, %s22
    %s57 = sor.u32 %s55, %s56
    %p58 = scmp.eq.s32.totalorder %s57, 0
    %s60 = sadd.s32 %s59, 1
    %s61 = scalar_select %p58, %s59, %s60
    %p64 = pneg %p58
    %p65 = scmp.eq.s32.totalorder %s7, 1
    %p66 = por %p64, %p65
    %p67 = scmp.ne.s32.totalorder %s59, %s62
    %p68 = scmp.eq.s32.totalorder %s7, 0
    %p69 = por %p67, %p68
    %p70 = scmp.ne.s32.totalorder %s59, %s62
    %p71 = scmp.eq.s32.totalorder %s12, 1
    %p72 = por %p70, %p71
    %p73 = scmp.ne.s32.totalorder %s62, %s63
    %p74 = scmp.eq.s32.totalorder %s12, 0
    %p75 = por %p73, %p74
    %p76 = scmp.ne.s32.totalorder %s62, %s63
    %p77 = scmp.eq.s32.totalorder %s13, 1
    %p78 = por %p76, %p77
    %p80 = scmp.ne.s32.totalorder %s63, %s79
    %p81 = scmp.eq.s32.totalorder %s13, 0
    %p82 = por %p80, %p81
    %p83 = scmp.le.s32.totalorder 1, %s7
    %p84 = scmp.lt.s32.totalorder %s7, 3
    %p85 = pnand %p83, %p84
    %p86 = pneg %p85
    // Predicated region
    $region9: #{_lambda_.2} parent=5 // pred_check
      _
    $region10: #{_lambda_.2} parent=5 // pred_check_branch
      %88 = sbr.rel (%p85) target = $region12
    $region11: #{_lambda_.2} parent=5 // pred_region
      %s89 = ssub.s32 %s7, 1
    $region12: #{_lambda_.2} parent=5 // pred_fallthru
      _
    %p90 = scmp.lt.s32.totalorder %s7, 2
    // Predicated region
    $region13: #{_lambda_.2} parent=5 // pred_check
      %p91 = pneg %p90
    $region14: #{_lambda_.2} parent=5 // pred_check_branch
      %93 = sbr.rel (%p91) target = $region16
    $region15: #{_lambda_.2} parent=5 // pred_region
      // Predicated region
      $region17: #{_lambda_.2} parent=15 // pred_check
        %p94 = pneg %p41
      $region18: #{_lambda_.2} parent=15 // pred_check_branch
        %96 = sbr.rel (%p94) target = $region20
      $region19: #{_lambda_.2} parent=15 // pred_region
        %s97 = smul.u32 8, %s14
        %p98 = scmp.lt.s32.totalorder %s97, 15
        %s99 = scalar_select %p98, %s97, 15
        %p100 = scmp.lt.s32.totalorder %s15, 0
        %s101 = scalar_select %p100, %s15, 0
        %s102 = smul.addr %s101, 2
        %s103 = smul.addr %s99, 2
        %s104 = sadd.s32 %s102, %s103
        %s105 = smul.addr %s104, 8
        %s106 = scalar_lea.vmem %s0, %s105
        %s107 = smul.u32 8, %s14
      $region20: #{_lambda_.2} parent=15 // pred_fallthru
        _
    $region16: #{_lambda_.2} parent=5 // pred_fallthru
      _
    %p108 = scmp.le.s32.totalorder 1, %s7
    %p109 = scmp.lt.s32.totalorder %s7, 3
    %p110 = pnand %p108, %p109
    %p111 = pneg %p110
    // Predicated region
    $region21: #{_lambda_.2} parent=5 // pred_check
      _
    $region22: #{_lambda_.2} parent=5 // pred_check_branch
      %113 = sbr.rel (%p110) target = $region24
    $region23: #{_lambda_.2} parent=5 // pred_region
      %s114 = ssub.s32 %s7, 1
      %s115 = smul.u32 8, %s16
      %p116 = scmp.lt.s32.totalorder %s115, 15
      %s117 = scalar_select %p116, %s115, 15
      %p118 = scmp.lt.s32.totalorder %s17, 0
      %s119 = scalar_select %p118, %s17, 0
      %s120 = smul.addr %s119, 2
      %s121 = smul.addr %s117, 2
      %s122 = sadd.s32 %s120, %s121
      %s123 = smul.addr %s122, 8
      %s124 = scalar_lea.vmem %s0, %s123
      %p125 = pneg %p47
      %p126 = pneg %p44
      %p127 = pneg %p75
      %p128 = pneg %p72
      %p129 = scmp.lt.s32.totalorder %s16, 1
      %s130 = scalar_select %p129, %s16, 1
      %p131 = scmp.lt.s32.totalorder %s17, 0
      %s132 = scalar_select %p131, %s17, 0
      %s133 = sadd.s32 %s132, %s130
      %s134 = smul.addr %s133, 8
      %s135 = scalar_lea.vmem %s1, %s134
      %s136 = smul.u32 8, %s16
      %p137 = scmp.lt.s32.totalorder %s136, 15
      %s138 = scalar_select %p137, %s136, 15
      %p139 = scmp.lt.s32.totalorder %s17, 0
      %s140 = scalar_select %p139, %s17, 0
      %s141 = smul.addr %s140, 2
      %s142 = smul.addr %s138, 2
      %s143 = sadd.s32 %s141, %s142
      %s144 = smul.addr %s143, 8
      %s145 = scalar_lea.vmem %s0, %s144
      %s146 = smul.u32 8, %s16
      %p147 = scmp.lt.s32.totalorder %s16, 1
      %s148 = scalar_select %p147, %s16, 1
      %p149 = scmp.lt.s32.totalorder %s17, 0
      %s150 = scalar_select %p149, %s17, 0
      %s151 = sadd.s32 %s150, %s148
      %s152 = smul.addr %s151, 8
      %s153 = scalar_lea.vmem %s1, %s152
      %v154 = vld [vmem:[%s145] sm:$0xff]
      %v155 = vld [vmem:[%s145 + $0x8] sm:$0xff]
      %v156 = vld [vmem:[%s145 + $0x10] sm:$0xff]
      %v157 = vld [vmem:[%s145 + $0x18] sm:$0xff]
      %v158 = vld [vmem:[%s145 + $0x20] sm:$0xff]
      %v159 = vld [vmem:[%s145 + $0x28] sm:$0xff]
      %v160 = vld [vmem:[%s145 + $0x30] sm:$0xff]
      %v161 = vld [vmem:[%s145 + $0x38] sm:$0xff]
      %v162 = vld [vmem:[%s145 + $0x40] sm:$0xff]
      %v163 = vld [vmem:[%s145 + $0x48] sm:$0xff]
      %v164 = vld [vmem:[%s145 + $0x50] sm:$0xff]
      %v165 = vld [vmem:[%s145 + $0x58] sm:$0xff]
      %v166 = vld [vmem:[%s145 + $0x60] sm:$0xff]
      %v167 = vld [vmem:[%s145 + $0x68] sm:$0xff]
      %v168 = vld [vmem:[%s145 + $0x70] sm:$0xff]
      %v169 = vld [vmem:[%s145 + $0x78] sm:$0xff]
      %v170 = vadd.f32 %v154, %v155
      %171 = vadd.xlane.f32.xlu0 %v170
      %v172 = vpop.xlane.xlu0 %171
      %v173 = vadd.f32 %v156, %v157
      %174 = vadd.xlane.f32.xlu0 %v173
      %v175 = vpop.xlane.xlu0 %174
      %v176 = vadd.f32 %v158, %v159
      %177 = vadd.xlane.f32.xlu0 %v176
      %v178 = vpop.xlane.xlu0 %177
      %v179 = vadd.f32 %v160, %v161
      %180 = vadd.xlane.f32.xlu0 %v179
      %v181 = vpop.xlane.xlu0 %180
      %v182 = vadd.f32 %v162, %v163
      %183 = vadd.xlane.f32.xlu0 %v182
      %v184 = vpop.xlane.xlu0 %183
      %v185 = vadd.f32 %v164, %v165
      %186 = vadd.xlane.f32.xlu0 %v185
      %v187 = vpop.xlane.xlu0 %186
      %v188 = vadd.f32 %v166, %v167
      %189 = vadd.xlane.f32.xlu0 %v188
      %v190 = vpop.xlane.xlu0 %189
      %v191 = vadd.f32 %v168, %v169
      %192 = vadd.xlane.f32.xlu0 %v191
      %v193 = vpop.xlane.xlu0 %192
      %v194 = vrcp.pop 256.0
      %v195 = vmul.f32 %v172, %v194
      %v196 = vmul.f32 %v175, %v194
      %v197 = vmul.f32 %v178, %v194
      %v198 = vmul.f32 %v181, %v194
      %v199 = vmul.f32 %v184, %v194
      %v200 = vmul.f32 %v187, %v194
      %v201 = vmul.f32 %v190, %v194
      %v202 = vmul.f32 %v193, %v194
      %v211 = vlaneseq
      %v212 = vand.u32 %v211, 127
      %v213 = vlaneseq
      %v214 = vshrl.u32 %v213, 7
      %v215 = vsub.s32 %v212, %v214
      %v216 = vrot.slane %v195, %v215
      %v217 = vlaneseq
      %v218 = vshrl.u32 %v217, 7
      %v219 = vsub.s32 %v212, %v218
      %v220 = vrot.slane %v196, %v219
      %v221 = vlaneseq
      %v222 = vshrl.u32 %v221, 7
      %v223 = vsub.s32 %v212, %v222
      %v224 = vrot.slane %v197, %v223
      %v225 = vlaneseq
      %v226 = vshrl.u32 %v225, 7
      %v227 = vsub.s32 %v212, %v226
      %v228 = vrot.slane %v198, %v227
      %v229 = vlaneseq
      %v230 = vshrl.u32 %v229, 7
      %v231 = vsub.s32 %v212, %v230
      %v232 = vrot.slane %v199, %v231
      %v233 = vlaneseq
      %v234 = vshrl.u32 %v233, 7
      %v235 = vsub.s32 %v212, %v234
      %v236 = vrot.slane %v200, %v235
      %v237 = vlaneseq
      %v238 = vshrl.u32 %v237, 7
      %v239 = vsub.s32 %v212, %v238
      %v240 = vrot.slane %v201, %v239
      %v241 = vlaneseq
      %v242 = vshrl.u32 %v241, 7
      %v243 = vsub.s32 %v212, %v242
      %v244 = vrot.slane %v202, %v243
      %vm245 = vcmask 1041409
      %v246 = vsel %vm245, %v220, %v216
      %vm247 = vcmask 1042434
      %v248 = vsel %vm247, %v224, %v246
      %vm249 = vcmask 1043459
      %v250 = vsel %vm249, %v228, %v248
      %vm251 = vcmask 1044484
      %v252 = vsel %vm251, %v232, %v250
      %vm253 = vcmask 1045509
      %v254 = vsel %vm253, %v236, %v252
      %vm255 = vcmask 1046534
      %v256 = vsel %vm255, %v240, %v254
      %vm257 = vcmask 1047559
      %v258 = vsel %vm257, %v244, %v256
      %vm260 = vcmask 64512
      %261 = vst.msk [vmem:[%s153] sm:$0xff] %vm260, %v258
      %p262 = scmp.lt.s32.totalorder %s16, 1
      %s263 = scalar_select %p262, %s16, 1
      %p264 = scmp.lt.s32.totalorder %s17, 0
      %s265 = scalar_select %p264, %s17, 0
      %s266 = sadd.s32 %s265, %s263
      %s267 = smul.addr %s266, 8
      %s268 = scalar_lea.vmem %s1, %s267
      // Predicated region
      $region25: #{_lambda_.2} parent=23 // pred_check
        %p269 = pneg %p72
      $region26: #{_lambda_.2} parent=23 // pred_check_branch
        %271 = sbr.rel (%p269) target = $region28
      $region27: #{_lambda_.2} parent=23 // pred_region
        _
      $region28: #{_lambda_.2} parent=23 // pred_fallthru
        _
    $region24: #{_lambda_.2} parent=5 // pred_fallthru
      _
    %p272 = scmp.le.s32.totalorder 2, %s7
    // Predicated region
    $region29: #{_lambda_.2} parent=5 // pred_check
      %p273 = pneg %p272
    $region30: #{_lambda_.2} parent=5 // pred_check_branch
      %275 = sbr.rel (%p273) target = $region32
    $region31: #{_lambda_.2} parent=5 // pred_region
      %s276 = ssub.s32 %s7, 2
      // Predicated region
      $region33: #{_lambda_.2} parent=31 // pred_check
        %p277 = pneg %p78
      $region34: #{_lambda_.2} parent=31 // pred_check_branch
        %279 = sbr.rel (%p277) target = $region36
      $region35: #{_lambda_.2} parent=31 // pred_region
        %p280 = scmp.lt.s32.totalorder %s18, 1
        %s281 = scalar_select %p280, %s18, 1
        %p282 = scmp.lt.s32.totalorder %s19, 0
        %s283 = scalar_select %p282, %s19, 0
        %s284 = sadd.s32 %s283, %s281
        %s285 = smul.addr %s284, 8
        %s286 = scalar_lea.vmem %s1, %s285
      $region36: #{_lambda_.2} parent=31 // pred_fallthru
        _
    $region32: #{_lambda_.2} parent=5 // pred_fallthru
      _
  $region6: #{_lambda_.2} parent=0 // loop_footer
    %s11 = sadd.s32 1, %s7
  $region7: #{_lambda_.2} parent=0 // loop_footer_branch
    %6 = sbr.rel target = $region3
  $region8: #{_lambda_.2} parent=0 // loop_exit
    _

// kernel: _lambda_.3
$region0: #{_lambda_.3}
  #allocation0 [shape = 'u32[]', space=smem, size = 0x4, offset = 0x4, fixed_abs, tag = 'smem constant byte address 0x4 - core index']
  #allocation1 [shape = 'u32[144,128]{1,0:T(1,128)}', space=vmem, size = 0x12000, scoped, tag = 'internal scratch']
  %s0 = inlined_call_operand.vmem [shape: f32[16,8,256], index: 0, kind: input, shape index: {}]
  %s1 = inlined_call_operand.vmem [shape: f32[2,1,8,24], index: 1, kind: input, shape index: {}]
  %s2 = inlined_call_operand.vmem [shape: f32[16,8,256], index: 2, kind: output, shape index: {}]
  %s3 = sld [smem:[#allocation0]]
  $region41: #{_lambda_.3} parent=0
    _
  %s5 = ssub.s32 1, %s3
  %s6 = scalar_select 0, %s5, %s3
  loop: start=0, step=1, limit=4
  $region2: #{_lambda_.3} parent=0 // loop_pre_header
    _
  $region3: #{_lambda_.3} parent=0 // loop_header
    %s8 = sphi 0, %s12
    %p9 = scmp.ge.s32.totalorder %s8, 4
    %s15 = sphi 0, %s27
    %s16 = sphi 0, %s23
    %s17 = sphi 0, %s15
    %s18 = sphi 0, %s16
    %s19 = sphi 0, %s17
    %s20 = sphi 0, %s18
    %s32 = sphi 0, %s34
    %s35 = sphi 0, %s32
    %s36 = sphi 0, %s35
    %s52 = sphi 0, %s36
    %s60 = sphi 0, %s62
    %s63 = sphi 0, %s60
    %s64 = sphi 0, %s63
    %s80 = sphi 0, %s64
    %s88 = sphi 0, %s90
    %s91 = sphi 0, %s88
    %s92 = sphi 0, %s91
    %s108 = sphi 0, %s92
  $region4: #{_lambda_.3} parent=0 // loop_header_branch
    %11 = sbr.rel (%p9) target = $region8
  $region5: #{_lambda_.3} parent=0 // loop_body
    %s13 = ssub.s32 %s8, 1
    %s14 = ssub.s32 %s8, 2
    %s21 = sadd.s32 1, %s16
    %p22 = scmp.ge.s32.totalorder %s21, 1
    %s23 = scalar_select %p22, 0, %s21
    %s24 = sadd.s32 1, %s15
    %s25 = scalar_select %p22, %s24, %s15
    %p26 = scmp.ge.s32.totalorder %s25, 2
    %s27 = scalar_select %p26, 0, %s25
    %s28 = ssub.s32 %s15, %s27
    %s29 = ssub.s32 %s16, %s23
    %s30 = sor.u32 %s28, %s29
    %p31 = scmp.eq.s32.totalorder %s30, 0
    %s33 = sadd.s32 %s32, 1
    %s34 = scalar_select %p31, %s32, %s33
    %p37 = pneg %p31
    %p38 = scmp.eq.s32.totalorder %s8, 1
    %p39 = por %p37, %p38
    %p40 = scmp.ne.s32.totalorder %s32, %s35
    %p41 = scmp.eq.s32.totalorder %s8, 0
    %p42 = por %p40, %p41
    %p43 = scmp.ne.s32.totalorder %s32, %s35
    %p44 = scmp.eq.s32.totalorder %s13, 1
    %p45 = por %p43, %p44
    %p46 = scmp.ne.s32.totalorder %s35, %s36
    %p47 = scmp.eq.s32.totalorder %s13, 0
    %p48 = por %p46, %p47
    %p49 = scmp.ne.s32.totalorder %s35, %s36
    %p50 = scmp.eq.s32.totalorder %s14, 1
    %p51 = por %p49, %p50
    %p53 = scmp.ne.s32.totalorder %s36, %s52
    %p54 = scmp.eq.s32.totalorder %s14, 0
    %p55 = por %p53, %p54
    %s56 = ssub.s32 %s15, %s27
    %s57 = ssub.s32 %s16, %s23
    %s58 = sor.u32 %s56, %s57
    %p59 = scmp.eq.s32.totalorder %s58, 0
    %s61 = sadd.s32 %s60, 1
    %s62 = scalar_select %p59, %s60, %s61
    %p65 = pneg %p59
    %p66 = scmp.eq.s32.totalorder %s8, 1
    %p67 = por %p65, %p66
    %p68 = scmp.ne.s32.totalorder %s60, %s63
    %p69 = scmp.eq.s32.totalorder %s8, 0
    %p70 = por %p68, %p69
    %p71 = scmp.ne.s32.totalorder %s60, %s63
    %p72 = scmp.eq.s32.totalorder %s13, 1
    %p73 = por %p71, %p72
    %p74 = scmp.ne.s32.totalorder %s63, %s64
    %p75 = scmp.eq.s32.totalorder %s13, 0
    %p76 = por %p74, %p75
    %p77 = scmp.ne.s32.totalorder %s63, %s64
    %p78 = scmp.eq.s32.totalorder %s14, 1
    %p79 = por %p77, %p78
    %p81 = scmp.ne.s32.totalorder %s64, %s80
    %p82 = scmp.eq.s32.totalorder %s14, 0
    %p83 = por %p81, %p82
    %s84 = ssub.s32 %s15, %s27
    %s85 = ssub.s32 %s16, %s23
    %s86 = sor.u32 %s84, %s85
    %p87 = scmp.eq.s32.totalorder %s86, 0
    %s89 = sadd.s32 %s88, 1
    %s90 = scalar_select %p87, %s88, %s89
    %p93 = pneg %p87
    %p94 = scmp.eq.s32.totalorder %s8, 1
    %p95 = por %p93, %p94
    %p96 = scmp.ne.s32.totalorder %s88, %s91
    %p97 = scmp.eq.s32.totalorder %s8, 0
    %p98 = por %p96, %p97
    %p99 = scmp.ne.s32.totalorder %s88, %s91
    %p100 = scmp.eq.s32.totalorder %s13, 1
    %p101 = por %p99, %p100
    %p102 = scmp.ne.s32.totalorder %s91, %s92
    %p103 = scmp.eq.s32.totalorder %s13, 0
    %p104 = por %p102, %p103
    %p105 = scmp.ne.s32.totalorder %s91, %s92
    %p106 = scmp.eq.s32.totalorder %s14, 1
    %p107 = por %p105, %p106
    %p109 = scmp.ne.s32.totalorder %s92, %s108
    %p110 = scmp.eq.s32.totalorder %s14, 0
    %p111 = por %p109, %p110
    %p112 = scmp.le.s32.totalorder 1, %s8
    %p113 = scmp.lt.s32.totalorder %s8, 3
    %p114 = pnand %p112, %p113
    %p115 = pneg %p114
    // Predicated region
    $region9: #{_lambda_.3} parent=5 // pred_check
      _
    $region10: #{_lambda_.3} parent=5 // pred_check_branch
      %117 = sbr.rel (%p114) target = $region12
    $region11: #{_lambda_.3} parent=5 // pred_region
      %s118 = ssub.s32 %s8, 1
    $region12: #{_lambda_.3} parent=5 // pred_fallthru
      _
    %p119 = scmp.lt.s32.totalorder %s8, 2
    // Predicated region
    $region13: #{_lambda_.3} parent=5 // pred_check
      %p120 = pneg %p119
    $region14: #{_lambda_.3} parent=5 // pred_check_branch
      %122 = sbr.rel (%p120) target = $region16
    $region15: #{_lambda_.3} parent=5 // pred_region
      // Predicated region
      $region17: #{_lambda_.3} parent=15 // pred_check
        %p123 = pneg %p42
      $region18: #{_lambda_.3} parent=15 // pred_check_branch
        %125 = sbr.rel (%p123) target = $region20
      $region19: #{_lambda_.3} parent=15 // pred_region
        %s126 = smul.u32 8, %s15
        %p127 = scmp.lt.s32.totalorder %s126, 15
        %s128 = scalar_select %p127, %s126, 15
        %p129 = scmp.lt.s32.totalorder %s16, 0
        %s130 = scalar_select %p129, %s16, 0
        %s131 = smul.addr %s130, 2
        %s132 = smul.addr %s128, 2
        %s133 = sadd.s32 %s131, %s132
        %s134 = smul.addr %s133, 8
        %s135 = scalar_lea.vmem %s0, %s134
        %s136 = smul.u32 8, %s15
      $region20: #{_lambda_.3} parent=15 // pred_fallthru
        _
      // Predicated region
      $region21: #{_lambda_.3} parent=15 // pred_check
        %p137 = pneg %p70
      $region22: #{_lambda_.3} parent=15 // pred_check_branch
        %139 = sbr.rel (%p137) target = $region24
      $region23: #{_lambda_.3} parent=15 // pred_region
        %p140 = scmp.lt.s32.totalorder %s15, 1
        %s141 = scalar_select %p140, %s15, 1
        %p142 = scmp.lt.s32.totalorder %s16, 0
        %s143 = scalar_select %p142, %s16, 0
        %s144 = sadd.s32 %s143, %s141
        %s145 = smul.addr %s144, 8
        %s146 = scalar_lea.vmem %s1, %s145
      $region24: #{_lambda_.3} parent=15 // pred_fallthru
        _
    $region16: #{_lambda_.3} parent=5 // pred_fallthru
      _
    %p147 = scmp.le.s32.totalorder 1, %s8
    %p148 = scmp.lt.s32.totalorder %s8, 3
    %p149 = pnand %p147, %p148
    %p150 = pneg %p149
    // Predicated region
    $region25: #{_lambda_.3} parent=5 // pred_check
      _
    $region26: #{_lambda_.3} parent=5 // pred_check_branch
      %152 = sbr.rel (%p149) target = $region28
    $region27: #{_lambda_.3} parent=5 // pred_region
      %s153 = ssub.s32 %s8, 1
      %s154 = smul.u32 8, %s17
      %p155 = scmp.lt.s32.totalorder %s154, 15
      %s156 = scalar_select %p155, %s154, 15
      %p157 = scmp.lt.s32.totalorder %s18, 0
      %s158 = scalar_select %p157, %s18, 0
      %s159 = smul.addr %s158, 2
      %s160 = smul.addr %s156, 2
      %s161 = sadd.s32 %s159, %s160
      %s162 = smul.addr %s161, 8
      %s163 = scalar_lea.vmem %s0, %s162
      %p164 = pneg %p48
      %p165 = pneg %p45
      %p166 = scmp.lt.s32.totalorder %s17, 1
      %s167 = scalar_select %p166, %s17, 1
      %p168 = scmp.lt.s32.totalorder %s18, 0
      %s169 = scalar_select %p168, %s18, 0
      %s170 = sadd.s32 %s169, %s167
      %s171 = smul.addr %s170, 8
      %s172 = scalar_lea.vmem %s1, %s171
      %p173 = pneg %p76
      %p174 = pneg %p73
      %p175 = pneg %p104
      %p176 = pneg %p101
      %s177 = smul.u32 8, %s17
      %p178 = scmp.lt.s32.totalorder %s177, 15
      %s179 = scalar_select %p178, %s177, 15
      %p180 = scmp.lt.s32.totalorder %s18, 0
      %s181 = scalar_select %p180, %s18, 0
      %s182 = smul.addr %s181, 2
      %s183 = smul.addr %s179, 2
      %s184 = sadd.s32 %s182, %s183
      %s185 = smul.addr %s184, 8
      %s186 = scalar_lea.vmem %s2, %s185
      %s187 = smul.u32 8, %s17
      %p188 = scmp.lt.s32.totalorder %s187, 15
      %s189 = scalar_select %p188, %s187, 15
      %p190 = scmp.lt.s32.totalorder %s18, 0
      %s191 = scalar_select %p190, %s18, 0
      %s192 = smul.addr %s191, 2
      %s193 = smul.addr %s189, 2
      %s194 = sadd.s32 %s192, %s193
      %s195 = smul.addr %s194, 8
      %s196 = scalar_lea.vmem %s0, %s195
      %s197 = smul.u32 8, %s17
      %p198 = scmp.lt.s32.totalorder %s17, 1
      %s199 = scalar_select %p198, %s17, 1
      %p200 = scmp.lt.s32.totalorder %s18, 0
      %s201 = scalar_select %p200, %s18, 0
      %s202 = sadd.s32 %s201, %s199
      %s203 = smul.addr %s202, 8
      %s204 = scalar_lea.vmem %s1, %s203
      %s205 = smul.u32 8, %s17
      %p206 = scmp.lt.s32.totalorder %s205, 15
      %s207 = scalar_select %p206, %s205, 15
      %p208 = scmp.lt.s32.totalorder %s18, 0
      %s209 = scalar_select %p208, %s18, 0
      %s210 = smul.addr %s209, 2
      %s211 = smul.addr %s207, 2
      %s212 = sadd.s32 %s210, %s211
      %s213 = smul.addr %s212, 8
      %s214 = scalar_lea.vmem %s2, %s213
      %s215 = smul.u32 8, %s17
      %v216 = vld [vmem:[%s204] sm:$0xff]
      %v217 = vld [vmem:[%s196] sm:$0xff]
      %v218 = vld [vmem:[%s196 + $0x8] sm:$0xff]
      %220 = vset.pattern.permute.xlu0 1
      %221 = vperm.xlu0 %220, %v216
      %v222 = vpop.permute.xlu0 %221
      %v224 = vmul.f32 %v217, %v222
      %v225 = vmul.f32 %v218, %v222
      %s226 = scalar_lea.vmem %s196, 16
      %v227 = vld [vmem:[%s226] sm:$0xff]
      %v228 = vld [vmem:[%s226 + $0x8] sm:$0xff]
      %229 = vset.pattern.permute.xlu0 2
      %230 = vperm.xlu0 %229, %v216
      %v231 = vpop.permute.xlu0 %230
      %v233 = vmul.f32 %v227, %v231
      %v234 = vmul.f32 %v228, %v231
      %v235 = vadd.f32 %v224, %v233
      %v236 = vadd.f32 %v225, %v234
      %237 = vst [vmem:[%s214] sm:$0xff] %v235
      %238 = vst [vmem:[%s214 + $0x8] sm:$0xff] %v236
      %v239 = vld [vmem:[%s196] sm:$0xff]
      %v240 = vld [vmem:[%s196 + $0x8] sm:$0xff]
      %241 = vset.pattern.permute.xlu0 3
      %242 = vperm.xlu0 %241, %v216
      %v243 = vpop.permute.xlu0 %242
      %v245 = vmul.f32 %v239, %v243
      %v246 = vmul.f32 %v240, %v243
      %v247 = vld [vmem:[%s226] sm:$0xff]
      %v248 = vld [vmem:[%s226 + $0x8] sm:$0xff]
      %249 = vset.pattern.permute.xlu0 4
      %250 = vperm.xlu0 %249, %v216
      %v251 = vpop.permute.xlu0 %250
      %v253 = vmul.f32 %v247, %v251
      %v254 = vmul.f32 %v248, %v251
      %v255 = vadd.f32 %v245, %v253
      %v256 = vadd.f32 %v246, %v254
      %s257 = scalar_lea.vmem %s196, 32
      %v258 = vld [vmem:[%s257] sm:$0xff]
      %v259 = vld [vmem:[%s257 + $0x8] sm:$0xff]
      %260 = vset.pattern.permute.xlu0 5
      %261 = vperm.xlu0 %260, %v216
      %v262 = vpop.permute.xlu0 %261
      %v264 = vmul.f32 %v258, %v262
      %v265 = vmul.f32 %v259, %v262
      %v266 = vadd.f32 %v255, %v264
      %v267 = vadd.f32 %v256, %v265
      %s268 = scalar_lea.vmem %s214, 16
      %269 = vst [vmem:[%s268] sm:$0xff] %v266
      %270 = vst [vmem:[%s268 + $0x8] sm:$0xff] %v267
      %v271 = vld [vmem:[%s226] sm:$0xff]
      %v272 = vld [vmem:[%s226 + $0x8] sm:$0xff]
      %273 = vset.pattern.permute.xlu0 6
      %274 = vperm.xlu0 %273, %v216
      %v275 = vpop.permute.xlu0 %274
      %v277 = vmul.f32 %v271, %v275
      %v278 = vmul.f32 %v272, %v275
      %v279 = vld [vmem:[%s257] sm:$0xff]
      %v280 = vld [vmem:[%s257 + $0x8] sm:$0xff]
      %281 = vset.pattern.permute.xlu0 7
      %282 = vperm.xlu0 %281, %v216
      %v283 = vpop.permute.xlu0 %282
      %v285 = vmul.f32 %v279, %v283
      %v286 = vmul.f32 %v280, %v283
      %v287 = vadd.f32 %v277, %v285
      %v288 = vadd.f32 %v278, %v286
      %s289 = scalar_lea.vmem %s196, 48
      %v290 = vld [vmem:[%s289] sm:$0xff]
      %v291 = vld [vmem:[%s289 + $0x8] sm:$0xff]
      %292 = vset.pattern.permute.xlu0 8
      %293 = vperm.xlu0 %292, %v216
      %v294 = vpop.permute.xlu0 %293
      %v296 = vmul.f32 %v290, %v294
      %v297 = vmul.f32 %v291, %v294
      %v298 = vadd.f32 %v287, %v296
      %v299 = vadd.f32 %v288, %v297
      %s300 = scalar_lea.vmem %s214, 32
      %301 = vst [vmem:[%s300] sm:$0xff] %v298
      %302 = vst [vmem:[%s300 + $0x8] sm:$0xff] %v299
      %v303 = vld [vmem:[%s257] sm:$0xff]
      %v304 = vld [vmem:[%s257 + $0x8] sm:$0xff]
      %305 = vset.pattern.permute.xlu0 9
      %306 = vperm.xlu0 %305, %v216
      %v307 = vpop.permute.xlu0 %306
      %v309 = vmul.f32 %v303, %v307
      %v310 = vmul.f32 %v304, %v307
      %v311 = vld [vmem:[%s289] sm:$0xff]
      %v312 = vld [vmem:[%s289 + $0x8] sm:$0xff]
      %313 = vset.pattern.permute.xlu0 10
      %314 = vperm.xlu0 %313, %v216
      %v315 = vpop.permute.xlu0 %314
      %v317 = vmul.f32 %v311, %v315
      %v318 = vmul.f32 %v312, %v315
      %v319 = vadd.f32 %v309, %v317
      %v320 = vadd.f32 %v310, %v318
      %s321 = scalar_lea.vmem %s196, 64
      %v322 = vld [vmem:[%s321] sm:$0xff]
      %v323 = vld [vmem:[%s321 + $0x8] sm:$0xff]
      %324 = vset.pattern.permute.xlu0 11
      %325 = vperm.xlu0 %324, %v216
      %v326 = vpop.permute.xlu0 %325
      %v328 = vmul.f32 %v322, %v326
      %v329 = vmul.f32 %v323, %v326
      %v330 = vadd.f32 %v319, %v328
      %v331 = vadd.f32 %v320, %v329
      %s332 = scalar_lea.vmem %s214, 48
      %333 = vst [vmem:[%s332] sm:$0xff] %v330
      %334 = vst [vmem:[%s332 + $0x8] sm:$0xff] %v331
      %v335 = vld [vmem:[%s289] sm:$0xff]
      %v336 = vld [vmem:[%s289 + $0x8] sm:$0xff]
      %337 = vset.pattern.permute.xlu0 12
      %338 = vperm.xlu0 %337, %v216
      %v339 = vpop.permute.xlu0 %338
      %v341 = vmul.f32 %v335, %v339
      %v342 = vmul.f32 %v336, %v339
      %v343 = vld [vmem:[%s321] sm:$0xff]
      %v344 = vld [vmem:[%s321 + $0x8] sm:$0xff]
      %345 = vset.pattern.permute.xlu0 13
      %346 = vperm.xlu0 %345, %v216
      %v347 = vpop.permute.xlu0 %346
      %v349 = vmul.f32 %v343, %v347
      %v350 = vmul.f32 %v344, %v347
      %v351 = vadd.f32 %v341, %v349
      %v352 = vadd.f32 %v342, %v350
      %s353 = scalar_lea.vmem %s196, 80
      %v354 = vld [vmem:[%s353] sm:$0xff]
      %v355 = vld [vmem:[%s353 + $0x8] sm:$0xff]
      %356 = vset.pattern.permute.xlu0 14
      %357 = vperm.xlu0 %356, %v216
      %v358 = vpop.permute.xlu0 %357
      %v360 = vmul.f32 %v354, %v358
      %v361 = vmul.f32 %v355, %v358
      %v362 = vadd.f32 %v351, %v360
      %v363 = vadd.f32 %v352, %v361
      %s364 = scalar_lea.vmem %s214, 64
      %365 = vst [vmem:[%s364] sm:$0xff] %v362
      %366 = vst [vmem:[%s364 + $0x8] sm:$0xff] %v363
      %v367 = vld [vmem:[%s321] sm:$0xff]
      %v368 = vld [vmem:[%s321 + $0x8] sm:$0xff]
      %369 = vset.pattern.permute.xlu0 15
      %370 = vperm.xlu0 %369, %v216
      %v371 = vpop.permute.xlu0 %370
      %v373 = vmul.f32 %v367, %v371
      %v374 = vmul.f32 %v368, %v371
      %v375 = vld [vmem:[%s353] sm:$0xff]
      %v376 = vld [vmem:[%s353 + $0x8] sm:$0xff]
      %377 = vset.pattern.permute.xlu0 16
      %378 = vperm.xlu0 %377, %v216
      %v379 = vpop.permute.xlu0 %378
      %v381 = vmul.f32 %v375, %v379
      %v382 = vmul.f32 %v376, %v379
      %v383 = vadd.f32 %v373, %v381
      %v384 = vadd.f32 %v374, %v382
      %s385 = scalar_lea.vmem %s196, 96
      %v386 = vld [vmem:[%s385] sm:$0xff]
      %v387 = vld [vmem:[%s385 + $0x8] sm:$0xff]
      %388 = vset.pattern.permute.xlu0 17
      %389 = vperm.xlu0 %388, %v216
      %v390 = vpop.permute.xlu0 %389
      %v392 = vmul.f32 %v386, %v390
      %v393 = vmul.f32 %v387, %v390
      %v394 = vadd.f32 %v383, %v392
      %v395 = vadd.f32 %v384, %v393
      %s396 = scalar_lea.vmem %s214, 80
      %397 = vst [vmem:[%s396] sm:$0xff] %v394
      %398 = vst [vmem:[%s396 + $0x8] sm:$0xff] %v395
      %v399 = vld [vmem:[%s353] sm:$0xff]
      %v400 = vld [vmem:[%s353 + $0x8] sm:$0xff]
      %401 = vset.pattern.permute.xlu0 18
      %402 = vperm.xlu0 %401, %v216
      %v403 = vpop.permute.xlu0 %402
      %v405 = vmul.f32 %v399, %v403
      %v406 = vmul.f32 %v400, %v403
      %v407 = vld [vmem:[%s385] sm:$0xff]
      %v408 = vld [vmem:[%s385 + $0x8] sm:$0xff]
      %409 = vset.pattern.permute.xlu0 19
      %410 = vperm.xlu0 %409, %v216
      %v411 = vpop.permute.xlu0 %410
      %v413 = vmul.f32 %v407, %v411
      %v414 = vmul.f32 %v408, %v411
      %v415 = vadd.f32 %v405, %v413
      %v416 = vadd.f32 %v406, %v414
      %s417 = scalar_lea.vmem %s196, 112
      %v418 = vld [vmem:[%s417] sm:$0xff]
      %v419 = vld [vmem:[%s417 + $0x8] sm:$0xff]
      %420 = vset.pattern.permute.xlu0 20
      %421 = vperm.xlu0 %420, %v216
      %v422 = vpop.permute.xlu0 %421
      %v424 = vmul.f32 %v418, %v422
      %v425 = vmul.f32 %v419, %v422
      %v426 = vadd.f32 %v415, %v424
      %v427 = vadd.f32 %v416, %v425
      %s428 = scalar_lea.vmem %s214, 96
      %429 = vst [vmem:[%s428] sm:$0xff] %v426
      %430 = vst [vmem:[%s428 + $0x8] sm:$0xff] %v427
      %v431 = vld [vmem:[%s385] sm:$0xff]
      %v432 = vld [vmem:[%s385 + $0x8] sm:$0xff]
      %433 = vset.pattern.permute.xlu0 21
      %434 = vperm.xlu0 %433, %v216
      %v435 = vpop.permute.xlu0 %434
      %v437 = vmul.f32 %v431, %v435
      %v438 = vmul.f32 %v432, %v435
      %v439 = vld [vmem:[%s417] sm:$0xff]
      %v440 = vld [vmem:[%s417 + $0x8] sm:$0xff]
      %441 = vset.pattern.permute.xlu0 22
      %442 = vperm.xlu0 %441, %v216
      %v443 = vpop.permute.xlu0 %442
      %v445 = vmul.f32 %v439, %v443
      %v446 = vmul.f32 %v440, %v443
      %v447 = vadd.f32 %v437, %v445
      %v448 = vadd.f32 %v438, %v446
      %s449 = scalar_lea.vmem %s214, 112
      %450 = vst [vmem:[%s449] sm:$0xff] %v447
      %451 = vst [vmem:[%s449 + $0x8] sm:$0xff] %v448
      %s452 = smul.u32 8, %s17
      %p453 = scmp.lt.s32.totalorder %s452, 15
      %s454 = scalar_select %p453, %s452, 15
      %p455 = scmp.lt.s32.totalorder %s18, 0
      %s456 = scalar_select %p455, %s18, 0
      %s457 = smul.addr %s456, 2
      %s458 = smul.addr %s454, 2
      %s459 = sadd.s32 %s457, %s458
      %s460 = smul.addr %s459, 8
      %s461 = scalar_lea.vmem %s2, %s460
      // Predicated region
      $region29: #{_lambda_.3} parent=27 // pred_check
        %p462 = pneg %p101
      $region30: #{_lambda_.3} parent=27 // pred_check_branch
        %464 = sbr.rel (%p462) target = $region32
      $region31: #{_lambda_.3} parent=27 // pred_region
        %s465 = smul.u32 8, %s17
      $region32: #{_lambda_.3} parent=27 // pred_fallthru
        _
    $region28: #{_lambda_.3} parent=5 // pred_fallthru
      _
    %p466 = scmp.le.s32.totalorder 2, %s8
    // Predicated region
    $region33: #{_lambda_.3} parent=5 // pred_check
      %p467 = pneg %p466
    $region34: #{_lambda_.3} parent=5 // pred_check_branch
      %469 = sbr.rel (%p467) target = $region36
    $region35: #{_lambda_.3} parent=5 // pred_region
      %s470 = ssub.s32 %s8, 2
      // Predicated region
      $region37: #{_lambda_.3} parent=35 // pred_check
        %p471 = pneg %p107
      $region38: #{_lambda_.3} parent=35 // pred_check_branch
        %473 = sbr.rel (%p471) target = $region40
      $region39: #{_lambda_.3} parent=35 // pred_region
        %s474 = smul.u32 8, %s19
        %p475 = scmp.lt.s32.totalorder %s474, 15
        %s476 = scalar_select %p475, %s474, 15
        %p477 = scmp.lt.s32.totalorder %s20, 0
        %s478 = scalar_select %p477, %s20, 0
        %s479 = smul.addr %s478, 2
        %s480 = smul.addr %s476, 2
        %s481 = sadd.s32 %s479, %s480
        %s482 = smul.addr %s481, 8
        %s483 = scalar_lea.vmem %s2, %s482
      $region40: #{_lambda_.3} parent=35 // pred_fallthru
        _
    $region36: #{_lambda_.3} parent=5 // pred_fallthru
      _
  $region6: #{_lambda_.3} parent=0 // loop_footer
    %s12 = sadd.s32 1, %s8
  $region7: #{_lambda_.3} parent=0 // loop_footer_branch
    %7 = sbr.rel target = $region3
  $region8: #{_lambda_.3} parent=0 // loop_exit
    _

</llo_original>
